<compile_context>
chip_gen: v5e
topology: v5e:2x2
jax: 0.10.0
libtpu: 0.0.40
codegen_flags: <defaults>
</compile_context>

<pallas_src>
import functools

import jax
import jax.numpy as jnp
from jax import lax
from jax.experimental import pallas as pl
from jax.experimental.pallas import tpu as pltpu


def _round_up(v, m):
    return ((v + m - 1) // m) * m


def _stg_kernel(x_ref, w_ref, b_ref, pfx_ref, out_ref, scores_ref, *, k):
    x = x_ref[...]                                            # (TM, D) native dtype
    # selector: x @ W^T + b (torch Linear layout; contract on W's last dim, f32 acc)
    logits = lax.dot_general(
        x, w_ref[...],
        dimension_numbers=(((1,), (1,)), ((), ())),
        preferred_element_type=jnp.float32,
    )
    logits = logits + b_ref[...].astype(jnp.float32)          # (1, D) broadcast
    scores = jax.nn.sigmoid(logits)                           # (TM, D) f32 in [0, 1]

    tm, d = scores.shape
    kf = float(k)

    # ---- Pass A: per-row k-th largest value (bit-exact element of `scores`). ----
    if k <= 16:
        # Extract the current max k times; intermediates are only (TM, D) / (TM, 1).
        def body(_, carry):
            cur, remaining, tau = carry
            m = jnp.max(cur, axis=-1, keepdims=True)          # (TM, 1)
            active = remaining > 0.0
            tau = jnp.where(active, m, tau)
            hit = cur == m                                    # (TM, D)
            cnt = jnp.sum(hit.astype(jnp.float32), axis=-1, keepdims=True)
            remaining = jnp.where(active, remaining - cnt, remaining)
            cur = jnp.where(hit, -1.0, cur)                   # sentinel below sigmoid range
            return cur, remaining, tau

        init = (
            scores,
            jnp.full((tm, 1), kf, dtype=jnp.float32),
            jnp.full((tm, 1), -1.0, dtype=jnp.float32),
        )
        _, _, tau = lax.fori_loop(0, k, body, init, unroll=True)
        gt = scores > tau                                     # (TM, D)
        eq = scores == tau
    else:
        # Binary search for the k-th largest over the int32 bitcast (monotone since
        # sigmoid scores are non-negative).  Fixed iteration count, no (TM, D) carry.
        bits = pltpu.bitcast(scores, jnp.int32)               # (TM, D)
        lo0 = jnp.zeros((tm, 1), dtype=jnp.int32)
        hi0 = jnp.full((tm, 1), 0x3F800000, dtype=jnp.int32)  # bits of 1.0

        def bs_body(_, carry):
            lo, hi = carry
            mid = lo + ((hi - lo + 1) >> 1)
            cnt = jnp.sum((bits >= mid).astype(jnp.float32), axis=-1, keepdims=True)
            ok = cnt >= kf
            return jnp.where(ok, mid, lo), jnp.where(ok, hi, mid - 1)

        lo, _ = lax.fori_loop(0, 32, bs_body, (lo0, hi0))     # lo == bits of k-th value
        gt = bits > lo                                        # (TM, D)
        eq = bits == lo

    # ---- Pass B: exact top-k mask, ties broken by lowest index (stable). ----
    count_gt = jnp.sum(gt.astype(jnp.float32), axis=-1, keepdims=True)
    # Inclusive prefix count of ties along the lane axis, on the MXU in bf16
    # (0/1 operands, f32 accumulation -> bit exact).  Prefix matrix is grid-resident.
    cum_eq = jnp.dot(eq.astype(jnp.bfloat16), pfx_ref[...],
                     preferred_element_type=jnp.float32)      # (TM, D)
    keep = gt | (eq & (cum_eq <= (kf - count_gt)))

    out_ref[...] = jnp.where(keep, x, jnp.zeros_like(x)).astype(out_ref.dtype)
    scores_ref[...] = scores.astype(scores_ref.dtype)


def lightweight_stg(x, weight, bias, *, keep_ratio=0.3, block_rows=512):
    """x: (..., D); weight: (D, D) torch-Linear layout (out, in); bias: (D,)."""
    *lead, d = x.shape
    k = max(1, min(d, int(keep_ratio * d)))

    x2 = x.reshape(-1, d)
    rows = x2.shape[0]

    itemsize = jnp.dtype(x.dtype).itemsize
    sub = max(8, 32 // itemsize)                 # dtype sublane multiple (8/16/32)

    bm = min(block_rows, _round_up(rows, sub))
    # Guarantee >= 2 grid steps when rows permit so both v7x TensorCores get work.
    if rows >= 2 * sub:
        bm = min(bm, _round_up(pl.cdiv(rows, 2), sub))

    w_bytes = jnp.dtype(weight.dtype).itemsize

    def est_vmem(bm_):
        tile = bm_ * d
        return (
            2 * tile * itemsize                  # x, double-buffered
            + 2 * 2 * tile * itemsize            # two outputs, double-buffered
            + 2 * d * d * w_bytes                # weight (grid-resident; budget 2 bufs)
            + 2 * d * d * 2                      # bf16 prefix matrix
            + 2 * max(d, 128) * 4                # bias
            + 8 * tile * 4                       # f32 in-kernel intermediates (generous)
        )

    budget = 48 * 1024 * 1024                    # conservative: fits v7x's 64 MiB VMEM
    while bm > sub and est_vmem(bm) > budget:
        bm = max(sub, _round_up(bm // 2, sub))

    vmem_limit = int(min(max(est_vmem(bm) + (4 << 20), 32 << 20), 64 << 20))

    bias2 = bias.reshape(1, d)
    # prefix[j, i] = 1 iff j <= i  -> inclusive prefix count via a single MXU matmul.
    prefix = (jnp.arange(d, dtype=jnp.int32)[:, None]
              <= jnp.arange(d, dtype=jnp.int32)[None, :]).astype(jnp.bfloat16)

    kernel = functools.partial(_stg_kernel, k=k)
    out, scores = pl.pallas_call(
        kernel,
        out_shape=(
            jax.ShapeDtypeStruct((rows, d), x.dtype),
            jax.ShapeDtypeStruct((rows, d), x.dtype),
        ),
        grid=(pl.cdiv(rows, bm),),
        in_specs=[
            pl.BlockSpec((bm, d), lambda i: (i, 0)),
            pl.BlockSpec((d, d), lambda i: (0, 0)),      # weight resident across grid
            pl.BlockSpec((1, d), lambda i: (0, 0)),      # bias resident
            pl.BlockSpec((d, d), lambda i: (0, 0)),      # bf16 prefix resident
        ],
        out_specs=(
            pl.BlockSpec((bm, d), lambda i: (i, 0)),
            pl.BlockSpec((bm, d), lambda i: (i, 0)),
        ),
        compiler_params=pltpu.CompilerParams(
            dimension_semantics=("parallel",),
            vmem_limit_bytes=vmem_limit,
        ),
    )(x2, weight, bias2, prefix)

    return out.reshape(*lead, d), scores.reshape(*lead, d)


def _reference(x, weight, bias, keep_ratio=0.3):
    """Pure-JAX reference mirroring the PyTorch forward."""
    d = x.shape[-1]
    k = max(1, int(keep_ratio * d))
    scores = jax.nn.sigmoid(x @ weight.T + bias)
    _, idx = lax.top_k(scores, k)                          # (..., k), stable ties
    mask = jnp.sum(jax.nn.one_hot(idx, d, dtype=x.dtype), axis=-2)
    return mask * x, scores


def _gate_from_scores(x, scores, k):
    """Top-k gate built from given scores (tests gating independent of matmul rounding)."""
    d = x.shape[-1]
    _, idx = lax.top_k(scores, k)
    mask = jnp.sum(jax.nn.one_hot(idx, d, dtype=x.dtype), axis=-2)
    return mask * x


if __name__ == "__main__":
    key = jax.random.PRNGKey(0)
    k1, k2, k3, k4, k5, k6 = jax.random.split(key, 6)

    # --- small-k path (unrolled extract-max): D = 32 -> k = 9 ---
    B, S, D = 2, 8, 32
    x = jax.random.normal(k1, (B, S, D), dtype=jnp.float32)
    bound = 1.0 / (D ** 0.5)
    weight = jax.random.uniform(k2, (D, D), jnp.float32, -bound, bound)
    bias = jax.random.uniform(k3, (D,), jnp.float32, -bound, bound)

    out, scores = lightweight_stg(x, weight, bias, keep_ratio=0.3)
    jax.block_until_ready((out, scores))

    ref_out, ref_scores = _reference(x, weight, bias, keep_ratio=0.3)
    assert out.shape == (B, S, D) and scores.shape == (B, S, D)
    assert jnp.allclose(scores, ref_scores, atol=1e-5, rtol=1e-5)
    assert jnp.allclose(out, ref_out, atol=1e-5, rtol=1e-5)
    assert bool(jnp.all(jnp.sum(out != 0, axis=-1) == 9))        # exactly k kept per row

    # --- large-k path (binary search): D = 256 -> k = 76 ---
    R, D2 = 32, 256
    K2 = max(1, int(0.3 * D2))
    xb = jax.random.normal(k4, (R, D2), dtype=jnp.float32)
    bound2 = 1.0 / (D2 ** 0.5)
    weight2 = jax.random.uniform(k5, (D2, D2), jnp.float32, -bound2, bound2)
    bias2 = jax.random.uniform(k6, (D2,), jnp.float32, -bound2, bound2)

    out2, scores2 = lightweight_stg(xb, weight2, bias2, keep_ratio=0.3)
    jax.block_until_ready((out2, scores2))

    _, ref_scores2 = _reference(xb, weight2, bias2, keep_ratio=0.3)
    assert jnp.allclose(scores2, ref_scores2, atol=1e-4, rtol=1e-4)
    # Gate must exactly match a stable top-k built from the kernel's own scores.
    assert jnp.allclose(out2, _gate_from_scores(xb, scores2, K2), atol=0.0, rtol=0.0)
    assert bool(jnp.all(jnp.sum(out2 != 0, axis=-1) == K2))      # exactly k kept per row

    print("KERNEL_OK")
</pallas_src>

<mosaic_0001>
module attributes {stable_mosaic.version = 11 : i64} {
  func.func @_stg_kernel(%arg0: i32, %arg1: memref<8x32xf32, #tpu.memory_space<vmem>>, %arg2: memref<32x32xf32, #tpu.memory_space<vmem>>, %arg3: memref<1x32xf32, #tpu.memory_space<vmem>>, %arg4: memref<32x32xbf16, #tpu.memory_space<vmem>>, %arg5: memref<8x32xf32, #tpu.memory_space<vmem>>, %arg6: memref<8x32xf32, #tpu.memory_space<vmem>>) attributes {dimension_semantics = [#tpu.dimension_semantics<parallel>], iteration_bounds = array<i64: 2>, scalar_prefetch = 0 : i64, scratch_operands = 0 : i64, tpu.core_type = #tpu.core_type<tc>, window_params = [{transform_indices = @transform_0, window_bounds = array<i64: 8, 32>}, {pipeline_mode = #tpu.pipeline_mode<synchronous>, transform_indices = @transform_1, window_bounds = array<i64: 32, 32>}, {pipeline_mode = #tpu.pipeline_mode<synchronous>, transform_indices = @transform_2, window_bounds = array<i64: 1, 32>}, {pipeline_mode = #tpu.pipeline_mode<synchronous>, transform_indices = @transform_3, window_bounds = array<i64: 32, 32>}, {transform_indices = @transform_4, window_bounds = array<i64: 8, 32>}, {transform_indices = @transform_5, window_bounds = array<i64: 8, 32>}]} {
    %c0 = arith.constant 0 : index
    %c0_0 = arith.constant 0 : index
    %0 = vector.load %arg1[%c0, %c0_0] : memref<8x32xf32, #tpu.memory_space<vmem>>, vector<8x32xf32>
    %c0_1 = arith.constant 0 : index
    %c0_2 = arith.constant 0 : index
    %1 = vector.load %arg2[%c0_1, %c0_2] : memref<32x32xf32, #tpu.memory_space<vmem>>, vector<32x32xf32>
    %cst = arith.constant dense<0.000000e+00> : vector<8x32xf32>
    %2 = tpu.matmul %0, %1, %cst {dimension_numbers = #tpu.dot_dimension_numbers<[1], [1], [0], [0], [0, 0, 1, 0], [], []>} : vector<8x32xf32>, vector<32x32xf32>, vector<8x32xf32> -> vector<8x32xf32>
    %c0_3 = arith.constant 0 : index
    %c0_4 = arith.constant 0 : index
    %3 = vector.load %arg3[%c0_3, %c0_4] : memref<1x32xf32, #tpu.memory_space<vmem>>, vector<1x32xf32>
    %4 = vector.broadcast %3 : vector<1x32xf32> to vector<8x32xf32>
    %5 = arith.addf %2, %4 : vector<8x32xf32>
    %6 = arith.negf %5 : vector<8x32xf32>
    %7 = math.exp %6 : vector<8x32xf32>
    %cst_5 = arith.constant 1.000000e+00 : f32
    %8 = vector.broadcast %cst_5 : f32 to vector<8x32xf32>
    %9 = arith.addf %8, %7 : vector<8x32xf32>
    %10 = arith.divf %8, %9 : vector<8x32xf32>
    %cst_6 = arith.constant 9.000000e+00 : f32
    %11 = vector.broadcast %cst_6 : f32 to vector<8x1xf32>
    %cst_7 = arith.constant -1.000000e+00 : f32
    %12 = vector.broadcast %cst_7 : f32 to vector<8x1xf32>
    %c0_i32 = arith.constant 0 : i32
    %cst_8 = arith.constant dense<0xFF800000> : vector<8xf32>
    %13 = vector.multi_reduction <maximumf>, %10, %cst_8 [1] : vector<8x32xf32> to vector<8xf32>
    %14 = vector.shape_cast %13 : vector<8xf32> to vector<8x1xf32>
    %cst_9 = arith.constant 0.000000e+00 : f32
    %15 = vector.broadcast %cst_9 : f32 to vector<8x1xf32>
    %16 = arith.cmpf ogt, %11, %15 : vector<8x1xf32>
    %17 = arith.select %16, %14, %12 : vector<8x1xi1>, vector<8x1xf32>
    %18 = vector.broadcast %14 : vector<8x1xf32> to vector<8x32xf32>
    %19 = arith.cmpf oeq, %10, %18 : vector<8x32xf32>
    %20 = arith.extui %19 : vector<8x32xi1> to vector<8x32xi32>
    %21 = arith.sitofp %20 : vector<8x32xi32> to vector<8x32xf32>
    %cst_10 = arith.constant dense<0.000000e+00> : vector<8xf32>
    %22 = vector.multi_reduction <add>, %21, %cst_10 [1] : vector<8x32xf32> to vector<8xf32>
    %23 = vector.shape_cast %22 : vector<8xf32> to vector<8x1xf32>
    %24 = arith.subf %11, %23 : vector<8x1xf32>
    %25 = arith.select %16, %24, %11 : vector<8x1xi1>, vector<8x1xf32>
    %cst_11 = arith.constant -1.000000e+00 : f32
    %26 = vector.broadcast %cst_11 : f32 to vector<8x32xf32>
    %27 = arith.select %19, %26, %10 : vector<8x32xi1>, vector<8x32xf32>
    %c1_i32 = arith.constant 1 : i32
    %cst_12 = arith.constant dense<0xFF800000> : vector<8xf32>
    %28 = vector.multi_reduction <maximumf>, %27, %cst_12 [1] : vector<8x32xf32> to vector<8xf32>
    %29 = vector.shape_cast %28 : vector<8xf32> to vector<8x1xf32>
    %cst_13 = arith.constant 0.000000e+00 : f32
    %30 = vector.broadcast %cst_13 : f32 to vector<8x1xf32>
    %31 = arith.cmpf ogt, %25, %30 : vector<8x1xf32>
    %32 = arith.select %31, %29, %17 : vector<8x1xi1>, vector<8x1xf32>
    %33 = vector.broadcast %29 : vector<8x1xf32> to vector<8x32xf32>
    %34 = arith.cmpf oeq, %27, %33 : vector<8x32xf32>
    %35 = arith.extui %34 : vector<8x32xi1> to vector<8x32xi32>
    %36 = arith.sitofp %35 : vector<8x32xi32> to vector<8x32xf32>
    %cst_14 = arith.constant dense<0.000000e+00> : vector<8xf32>
    %37 = vector.multi_reduction <add>, %36, %cst_14 [1] : vector<8x32xf32> to vector<8xf32>
    %38 = vector.shape_cast %37 : vector<8xf32> to vector<8x1xf32>
    %39 = arith.subf %25, %38 : vector<8x1xf32>
    %40 = arith.select %31, %39, %25 : vector<8x1xi1>, vector<8x1xf32>
    %cst_15 = arith.constant -1.000000e+00 : f32
    %41 = vector.broadcast %cst_15 : f32 to vector<8x32xf32>
    %42 = arith.select %34, %41, %27 : vector<8x32xi1>, vector<8x32xf32>
    %c2_i32 = arith.constant 2 : i32
    %cst_16 = arith.constant dense<0xFF800000> : vector<8xf32>
    %43 = vector.multi_reduction <maximumf>, %42, %cst_16 [1] : vector<8x32xf32> to vector<8xf32>
    %44 = vector.shape_cast %43 : vector<8xf32> to vector<8x1xf32>
    %cst_17 = arith.constant 0.000000e+00 : f32
    %45 = vector.broadcast %cst_17 : f32 to vector<8x1xf32>
    %46 = arith.cmpf ogt, %40, %45 : vector<8x1xf32>
    %47 = arith.select %46, %44, %32 : vector<8x1xi1>, vector<8x1xf32>
    %48 = vector.broadcast %44 : vector<8x1xf32> to vector<8x32xf32>
    %49 = arith.cmpf oeq, %42, %48 : vector<8x32xf32>
    %50 = arith.extui %49 : vector<8x32xi1> to vector<8x32xi32>
    %51 = arith.sitofp %50 : vector<8x32xi32> to vector<8x32xf32>
    %cst_18 = arith.constant dense<0.000000e+00> : vector<8xf32>
    %52 = vector.multi_reduction <add>, %51, %cst_18 [1] : vector<8x32xf32> to vector<8xf32>
    %53 = vector.shape_cast %52 : vector<8xf32> to vector<8x1xf32>
    %54 = arith.subf %40, %53 : vector<8x1xf32>
    %55 = arith.select %46, %54, %40 : vector<8x1xi1>, vector<8x1xf32>
    %cst_19 = arith.constant -1.000000e+00 : f32
    %56 = vector.broadcast %cst_19 : f32 to vector<8x32xf32>
    %57 = arith.select %49, %56, %42 : vector<8x32xi1>, vector<8x32xf32>
    %c3_i32 = arith.constant 3 : i32
    %cst_20 = arith.constant dense<0xFF800000> : vector<8xf32>
    %58 = vector.multi_reduction <maximumf>, %57, %cst_20 [1] : vector<8x32xf32> to vector<8xf32>
    %59 = vector.shape_cast %58 : vector<8xf32> to vector<8x1xf32>
    %cst_21 = arith.constant 0.000000e+00 : f32
    %60 = vector.broadcast %cst_21 : f32 to vector<8x1xf32>
    %61 = arith.cmpf ogt, %55, %60 : vector<8x1xf32>
    %62 = arith.select %61, %59, %47 : vector<8x1xi1>, vector<8x1xf32>
    %63 = vector.broadcast %59 : vector<8x1xf32> to vector<8x32xf32>
    %64 = arith.cmpf oeq, %57, %63 : vector<8x32xf32>
    %65 = arith.extui %64 : vector<8x32xi1> to vector<8x32xi32>
    %66 = arith.sitofp %65 : vector<8x32xi32> to vector<8x32xf32>
    %cst_22 = arith.constant dense<0.000000e+00> : vector<8xf32>
    %67 = vector.multi_reduction <add>, %66, %cst_22 [1] : vector<8x32xf32> to vector<8xf32>
    %68 = vector.shape_cast %67 : vector<8xf32> to vector<8x1xf32>
    %69 = arith.subf %55, %68 : vector<8x1xf32>
    %70 = arith.select %61, %69, %55 : vector<8x1xi1>, vector<8x1xf32>
    %cst_23 = arith.constant -1.000000e+00 : f32
    %71 = vector.broadcast %cst_23 : f32 to vector<8x32xf32>
    %72 = arith.select %64, %71, %57 : vector<8x32xi1>, vector<8x32xf32>
    %c4_i32 = arith.constant 4 : i32
    %cst_24 = arith.constant dense<0xFF800000> : vector<8xf32>
    %73 = vector.multi_reduction <maximumf>, %72, %cst_24 [1] : vector<8x32xf32> to vector<8xf32>
    %74 = vector.shape_cast %73 : vector<8xf32> to vector<8x1xf32>
    %cst_25 = arith.constant 0.000000e+00 : f32
    %75 = vector.broadcast %cst_25 : f32 to vector<8x1xf32>
    %76 = arith.cmpf ogt, %70, %75 : vector<8x1xf32>
    %77 = arith.select %76, %74, %62 : vector<8x1xi1>, vector<8x1xf32>
    %78 = vector.broadcast %74 : vector<8x1xf32> to vector<8x32xf32>
    %79 = arith.cmpf oeq, %72, %78 : vector<8x32xf32>
    %80 = arith.extui %79 : vector<8x32xi1> to vector<8x32xi32>
    %81 = arith.sitofp %80 : vector<8x32xi32> to vector<8x32xf32>
    %cst_26 = arith.constant dense<0.000000e+00> : vector<8xf32>
    %82 = vector.multi_reduction <add>, %81, %cst_26 [1] : vector<8x32xf32> to vector<8xf32>
    %83 = vector.shape_cast %82 : vector<8xf32> to vector<8x1xf32>
    %84 = arith.subf %70, %83 : vector<8x1xf32>
    %85 = arith.select %76, %84, %70 : vector<8x1xi1>, vector<8x1xf32>
    %cst_27 = arith.constant -1.000000e+00 : f32
    %86 = vector.broadcast %cst_27 : f32 to vector<8x32xf32>
    %87 = arith.select %79, %86, %72 : vector<8x32xi1>, vector<8x32xf32>
    %c5_i32 = arith.constant 5 : i32
    %cst_28 = arith.constant dense<0xFF800000> : vector<8xf32>
    %88 = vector.multi_reduction <maximumf>, %87, %cst_28 [1] : vector<8x32xf32> to vector<8xf32>
    %89 = vector.shape_cast %88 : vector<8xf32> to vector<8x1xf32>
    %cst_29 = arith.constant 0.000000e+00 : f32
    %90 = vector.broadcast %cst_29 : f32 to vector<8x1xf32>
    %91 = arith.cmpf ogt, %85, %90 : vector<8x1xf32>
    %92 = arith.select %91, %89, %77 : vector<8x1xi1>, vector<8x1xf32>
    %93 = vector.broadcast %89 : vector<8x1xf32> to vector<8x32xf32>
    %94 = arith.cmpf oeq, %87, %93 : vector<8x32xf32>
    %95 = arith.extui %94 : vector<8x32xi1> to vector<8x32xi32>
    %96 = arith.sitofp %95 : vector<8x32xi32> to vector<8x32xf32>
    %cst_30 = arith.constant dense<0.000000e+00> : vector<8xf32>
    %97 = vector.multi_reduction <add>, %96, %cst_30 [1] : vector<8x32xf32> to vector<8xf32>
    %98 = vector.shape_cast %97 : vector<8xf32> to vector<8x1xf32>
    %99 = arith.subf %85, %98 : vector<8x1xf32>
    %100 = arith.select %91, %99, %85 : vector<8x1xi1>, vector<8x1xf32>
    %cst_31 = arith.constant -1.000000e+00 : f32
    %101 = vector.broadcast %cst_31 : f32 to vector<8x32xf32>
    %102 = arith.select %94, %101, %87 : vector<8x32xi1>, vector<8x32xf32>
    %c6_i32 = arith.constant 6 : i32
    %cst_32 = arith.constant dense<0xFF800000> : vector<8xf32>
    %103 = vector.multi_reduction <maximumf>, %102, %cst_32 [1] : vector<8x32xf32> to vector<8xf32>
    %104 = vector.shape_cast %103 : vector<8xf32> to vector<8x1xf32>
    %cst_33 = arith.constant 0.000000e+00 : f32
    %105 = vector.broadcast %cst_33 : f32 to vector<8x1xf32>
    %106 = arith.cmpf ogt, %100, %105 : vector<8x1xf32>
    %107 = arith.select %106, %104, %92 : vector<8x1xi1>, vector<8x1xf32>
    %108 = vector.broadcast %104 : vector<8x1xf32> to vector<8x32xf32>
    %109 = arith.cmpf oeq, %102, %108 : vector<8x32xf32>
    %110 = arith.extui %109 : vector<8x32xi1> to vector<8x32xi32>
    %111 = arith.sitofp %110 : vector<8x32xi32> to vector<8x32xf32>
    %cst_34 = arith.constant dense<0.000000e+00> : vector<8xf32>
    %112 = vector.multi_reduction <add>, %111, %cst_34 [1] : vector<8x32xf32> to vector<8xf32>
    %113 = vector.shape_cast %112 : vector<8xf32> to vector<8x1xf32>
    %114 = arith.subf %100, %113 : vector<8x1xf32>
    %115 = arith.select %106, %114, %100 : vector<8x1xi1>, vector<8x1xf32>
    %cst_35 = arith.constant -1.000000e+00 : f32
    %116 = vector.broadcast %cst_35 : f32 to vector<8x32xf32>
    %117 = arith.select %109, %116, %102 : vector<8x32xi1>, vector<8x32xf32>
    %c7_i32 = arith.constant 7 : i32
    %cst_36 = arith.constant dense<0xFF800000> : vector<8xf32>
    %118 = vector.multi_reduction <maximumf>, %117, %cst_36 [1] : vector<8x32xf32> to vector<8xf32>
    %119 = vector.shape_cast %118 : vector<8xf32> to vector<8x1xf32>
    %cst_37 = arith.constant 0.000000e+00 : f32
    %120 = vector.broadcast %cst_37 : f32 to vector<8x1xf32>
    %121 = arith.cmpf ogt, %115, %120 : vector<8x1xf32>
    %122 = arith.select %121, %119, %107 : vector<8x1xi1>, vector<8x1xf32>
    %123 = vector.broadcast %119 : vector<8x1xf32> to vector<8x32xf32>
    %124 = arith.cmpf oeq, %117, %123 : vector<8x32xf32>
    %125 = arith.extui %124 : vector<8x32xi1> to vector<8x32xi32>
    %126 = arith.sitofp %125 : vector<8x32xi32> to vector<8x32xf32>
    %cst_38 = arith.constant dense<0.000000e+00> : vector<8xf32>
    %127 = vector.multi_reduction <add>, %126, %cst_38 [1] : vector<8x32xf32> to vector<8xf32>
    %128 = vector.shape_cast %127 : vector<8xf32> to vector<8x1xf32>
    %129 = arith.subf %115, %128 : vector<8x1xf32>
    %130 = arith.select %121, %129, %115 : vector<8x1xi1>, vector<8x1xf32>
    %cst_39 = arith.constant -1.000000e+00 : f32
    %131 = vector.broadcast %cst_39 : f32 to vector<8x32xf32>
    %132 = arith.select %124, %131, %117 : vector<8x32xi1>, vector<8x32xf32>
    %c8_i32 = arith.constant 8 : i32
    %cst_40 = arith.constant dense<0xFF800000> : vector<8xf32>
    %133 = vector.multi_reduction <maximumf>, %132, %cst_40 [1] : vector<8x32xf32> to vector<8xf32>
    %134 = vector.shape_cast %133 : vector<8xf32> to vector<8x1xf32>
    %cst_41 = arith.constant 0.000000e+00 : f32
    %135 = vector.broadcast %cst_41 : f32 to vector<8x1xf32>
    %136 = arith.cmpf ogt, %130, %135 : vector<8x1xf32>
    %137 = arith.select %136, %134, %122 : vector<8x1xi1>, vector<8x1xf32>
    %138 = vector.broadcast %134 : vector<8x1xf32> to vector<8x32xf32>
    %139 = arith.cmpf oeq, %132, %138 : vector<8x32xf32>
    %140 = arith.extui %139 : vector<8x32xi1> to vector<8x32xi32>
    %141 = arith.sitofp %140 : vector<8x32xi32> to vector<8x32xf32>
    %cst_42 = arith.constant dense<0.000000e+00> : vector<8xf32>
    %142 = vector.multi_reduction <add>, %141, %cst_42 [1] : vector<8x32xf32> to vector<8xf32>
    %143 = vector.shape_cast %142 : vector<8xf32> to vector<8x1xf32>
    %144 = arith.subf %130, %143 : vector<8x1xf32>
    %145 = arith.select %136, %144, %130 : vector<8x1xi1>, vector<8x1xf32>
    %cst_43 = arith.constant -1.000000e+00 : f32
    %146 = vector.broadcast %cst_43 : f32 to vector<8x32xf32>
    %147 = arith.select %139, %146, %132 : vector<8x32xi1>, vector<8x32xf32>
    %148 = vector.broadcast %137 : vector<8x1xf32> to vector<8x32xf32>
    %149 = arith.cmpf ogt, %10, %148 : vector<8x32xf32>
    %150 = vector.broadcast %137 : vector<8x1xf32> to vector<8x32xf32>
    %151 = arith.cmpf oeq, %10, %150 : vector<8x32xf32>
    %152 = arith.extui %149 : vector<8x32xi1> to vector<8x32xi32>
    %153 = arith.sitofp %152 : vector<8x32xi32> to vector<8x32xf32>
    %cst_44 = arith.constant dense<0.000000e+00> : vector<8xf32>
    %154 = vector.multi_reduction <add>, %153, %cst_44 [1] : vector<8x32xf32> to vector<8xf32>
    %155 = vector.shape_cast %154 : vector<8xf32> to vector<8x1xf32>
    %156 = arith.extui %151 : vector<8x32xi1> to vector<8x32xi32>
    %157 = arith.sitofp %156 : vector<8x32xi32> to vector<8x32xf32>
    %158 = arith.truncf %157 : vector<8x32xf32> to vector<8x32xbf16>
    %c0_45 = arith.constant 0 : index
    %c0_46 = arith.constant 0 : index
    %159 = vector.load %arg4[%c0_45, %c0_46] : memref<32x32xbf16, #tpu.memory_space<vmem>>, vector<32x32xbf16>
    %cst_47 = arith.constant dense<0.000000e+00> : vector<8x32xf32>
    %160 = tpu.matmul %158, %159, %cst_47 {dimension_numbers = #tpu.dot_dimension_numbers<[1], [0], [0], [1], [0, 0, 1, 1], [], []>} : vector<8x32xbf16>, vector<32x32xbf16>, vector<8x32xf32> -> vector<8x32xf32>
    %cst_48 = arith.constant 9.000000e+00 : f32
    %161 = vector.broadcast %cst_48 : f32 to vector<8x1xf32>
    %162 = arith.subf %161, %155 : vector<8x1xf32>
    %163 = vector.broadcast %162 : vector<8x1xf32> to vector<8x32xf32>
    %164 = arith.cmpf ole, %160, %163 : vector<8x32xf32>
    %165 = arith.andi %151, %164 : vector<8x32xi1>
    %166 = arith.ori %149, %165 : vector<8x32xi1>
    %cst_49 = arith.constant 0.000000e+00 : f32
    %167 = vector.broadcast %cst_49 : f32 to vector<8x32xf32>
    %168 = arith.select %166, %0, %167 : vector<8x32xi1>, vector<8x32xf32>
    %c0_50 = arith.constant 0 : index
    %c0_51 = arith.constant 0 : index
    %169 = vector.load %arg5[%c0_50, %c0_51] : memref<8x32xf32, #tpu.memory_space<vmem>>, vector<8x32xf32>
    tpu.vector_store %arg5[%c0_50, %c0_51], %168 {strides = array<i32>} : memref<8x32xf32, #tpu.memory_space<vmem>>, vector<8x32xf32>,
    %c0_52 = arith.constant 0 : index
    %c0_53 = arith.constant 0 : index
    %170 = vector.load %arg6[%c0_52, %c0_53] : memref<8x32xf32, #tpu.memory_space<vmem>>, vector<8x32xf32>
    tpu.vector_store %arg6[%c0_52, %c0_53], %10 {strides = array<i32>} : memref<8x32xf32, #tpu.memory_space<vmem>>, vector<8x32xf32>,
    return
  }
  func.func @transform_0(%arg0: i32) -> (i32, i32) {
    %c0_i32 = arith.constant 0 : i32
    %c0_i32_0 = arith.constant 0 : i32
    return %arg0, %c0_i32 : i32, i32
  }
  func.func @transform_1(%arg0: i32) -> (i32, i32) {
    %c0_i32 = arith.constant 0 : i32
    %c0_i32_0 = arith.constant 0 : i32
    %c0_i32_1 = arith.constant 0 : i32
    return %c0_i32, %c0_i32_0 : i32, i32
  }
  func.func @transform_2(%arg0: i32) -> (i32, i32) {
    %c0_i32 = arith.constant 0 : i32
    %c0_i32_0 = arith.constant 0 : i32
    %c0_i32_1 = arith.constant 0 : i32
    return %c0_i32, %c0_i32_0 : i32, i32
  }
  func.func @transform_3(%arg0: i32) -> (i32, i32) {
    %c0_i32 = arith.constant 0 : i32
    %c0_i32_0 = arith.constant 0 : i32
    %c0_i32_1 = arith.constant 0 : i32
    return %c0_i32, %c0_i32_0 : i32, i32
  }
  func.func @transform_4(%arg0: i32) -> (i32, i32) {
    %c0_i32 = arith.constant 0 : i32
    %c0_i32_0 = arith.constant 0 : i32
    return %arg0, %c0_i32 : i32, i32
  }
  func.func @transform_5(%arg0: i32) -> (i32, i32) {
    %c0_i32 = arith.constant 0 : i32
    %c0_i32_0 = arith.constant 0 : i32
    return %arg0, %c0_i32 : i32, i32
  }
}

</mosaic_0001>

<llo_original>
// kernel: tpu_custom_call.1
$region0: #{tpu_custom_call.1}
  #allocation0 [shape = 'u32[]', space=smem, size = 0x4, offset = 0x4, fixed_abs, tag = 'smem constant byte address 0x4 - core index']
  #allocation1 [shape = 'u32[72,128]{1,0:T(1,128)}', space=vmem, size = 0x9000, scoped, tag = 'internal scratch']
  %s0 = inlined_call_operand.hbm [shape: f32[16,32], index: 0, kind: input, shape index: {}]
  %s1 = inlined_call_operand.hbm [shape: f32[32,32], index: 1, kind: input, shape index: {}]
  %s2 = inlined_call_operand.vmem [shape: f32[1,32], index: 2, kind: input, shape index: {}]
  %s3 = inlined_call_operand.hbm [shape: bf16[32,32], index: 3, kind: input, shape index: {}]
  %s4 = inlined_call_operand.hbm [shape: f32[16,32], index: 4, kind: output, shape index: {0}]
  %s5 = inlined_call_operand.hbm [shape: f32[16,32], index: 5, kind: output, shape index: {1}]
  %6 = xla_tuple %s4, %s5
  %s7 = sld [smem:[#allocation0]]
  $region69: #{tpu_custom_call.1} parent=0
    _
  %s9 = ssub.s32 1, %s7
  %s10 = scalar_select 0, %s9, %s7
  $region1: #{tpu_custom_call.1} parent=0
    #allocation2 [shape = 'u8[8192]{0}', space=vmem, size = 0x2000, scoped, tag = 'input window, operand 0']
    #allocation3 [shape = 's32[2]{0}', space=sflag, size = 0x8, scoped, tag = 'scoped memory for tpu_custom_call.1']
    #allocation4 [shape = 's32[2]{0}', space=sflag, size = 0x8, scoped, tag = 'scoped memory for tpu_custom_call.1']
    #allocation5 [shape = 'u8[16384]{0}', space=vmem, size = 0x4000, scoped, tag = 'input window, operand 1, single buffered']
    #allocation6 [shape = 's32[1]{0}', space=sflag, size = 0x4, scoped, tag = 'scoped memory for tpu_custom_call.1']
    #allocation7 [shape = 'u8[8192]{0}', space=vmem, size = 0x2000, scoped, tag = 'input window, operand 3, single buffered']
    #allocation8 [shape = 'u8[8192]{0}', space=vmem, size = 0x2000, scoped, tag = 'output window, operand 0']
    #allocation9 [shape = 'u8[8192]{0}', space=vmem, size = 0x2000, scoped, tag = 'output window, operand 1']
    #allocation10 [shape = 's32[2]{0}', space=sflag, size = 0x8, scoped, tag = 'scoped memory for tpu_custom_call.1']
    %11 = vsyncpa [#allocation3], 0
    %s12 = scalar_lea.sflag [#allocation3], 1
    %13 = vsyncpa %s12, 0
    %14 = vsyncpa [#allocation6], 0
    %15 = vsyncpa [#allocation4], 0
    %s16 = scalar_lea.sflag [#allocation4], 1
    %17 = vsyncpa %s16, 0
    %18 = vsyncpa [#allocation10], 0
    %s19 = scalar_lea.sflag [#allocation10], 1
    %20 = vsyncpa %s19, 0
    loop: start=0, step=1, limit=4
    $region2: #{tpu_custom_call.1} parent=1 // loop_pre_header
      _
    $region3: #{tpu_custom_call.1} parent=1 // loop_header
      %s22 = sphi 0, %s26
      %p23 = scmp.ge.s32.totalorder %s22, 4
      %s32 = sphi 0, %s34
      %s35 = sphi 0, %s32
      %s36 = sphi 0, %s35
      %s52 = sphi 0, %s36
      %s56 = sphi 0, %s56
      %s58 = sphi 0, %s56
      %s59 = sphi 0, %s58
      %s73 = sphi 0, %s59
      %s77 = sphi 0, %s77
      %s79 = sphi 0, %s77
      %s80 = sphi 0, %s79
      %s94 = sphi 0, %s80
      %s98 = sphi 0, %s98
      %s100 = sphi 0, %s98
      %s101 = sphi 0, %s100
      %s115 = sphi 0, %s101
      %s121 = sphi 0, %s123
      %s124 = sphi 0, %s121
      %s125 = sphi 0, %s124
      %s141 = sphi 0, %s125
      %s147 = sphi 0, %s149
      %s150 = sphi 0, %s147
      %s151 = sphi 0, %s150
      %s167 = sphi 0, %s151
    $region4: #{tpu_custom_call.1} parent=1 // loop_header_branch
      %25 = sbr.rel (%p23) target = $region8
    $region5: #{tpu_custom_call.1} parent=1 // loop_body
      %s27 = ssub.s32 %s22, 1
      %s28 = ssub.s32 %s22, 2
      %s29 = sadd.s32 %s22, 1
      %s30 = ssub.s32 %s22, %s29
      %p31 = scmp.eq.s32.totalorder %s30, 0
      %s33 = sadd.s32 %s32, 1
      %s34 = scalar_select %p31, %s32, %s33
      %p37 = pneg %p31
      %p38 = scmp.eq.s32.totalorder %s22, 1
      %p39 = por %p37, %p38
      %p40 = scmp.ne.s32.totalorder %s32, %s35
      %p41 = scmp.eq.s32.totalorder %s22, 0
      %p42 = por %p40, %p41
      %p43 = scmp.ne.s32.totalorder %s32, %s35
      %p44 = scmp.eq.s32.totalorder %s27, 1
      %p45 = por %p43, %p44
      %p46 = scmp.ne.s32.totalorder %s35, %s36
      %p47 = scmp.eq.s32.totalorder %s27, 0
      %p48 = por %p46, %p47
      %p49 = scmp.ne.s32.totalorder %s35, %s36
      %p50 = scmp.eq.s32.totalorder %s28, 1
      %p51 = por %p49, %p50
      %p53 = scmp.ne.s32.totalorder %s36, %s52
      %p54 = scmp.eq.s32.totalorder %s28, 0
      %p55 = por %p53, %p54
      %s57 = sadd.s32 %s56, 1
      %p60 = scmp.eq.s32.totalorder %s22, 1
      %p61 = scmp.ne.s32.totalorder %s56, %s58
      %p62 = scmp.eq.s32.totalorder %s22, 0
      %p63 = por %p61, %p62
      %p64 = scmp.ne.s32.totalorder %s56, %s58
      %p65 = scmp.eq.s32.totalorder %s27, 1
      %p66 = por %p64, %p65
      %p67 = scmp.ne.s32.totalorder %s58, %s59
      %p68 = scmp.eq.s32.totalorder %s27, 0
      %p69 = por %p67, %p68
      %p70 = scmp.ne.s32.totalorder %s58, %s59
      %p71 = scmp.eq.s32.totalorder %s28, 1
      %p72 = por %p70, %p71
      %p74 = scmp.ne.s32.totalorder %s59, %s73
      %p75 = scmp.eq.s32.totalorder %s28, 0
      %p76 = por %p74, %p75
      %s78 = sadd.s32 %s77, 1
      %p81 = scmp.eq.s32.totalorder %s22, 1
      %p82 = scmp.ne.s32.totalorder %s77, %s79
      %p83 = scmp.eq.s32.totalorder %s22, 0
      %p84 = por %p82, %p83
      %p85 = scmp.ne.s32.totalorder %s77, %s79
      %p86 = scmp.eq.s32.totalorder %s27, 1
      %p87 = por %p85, %p86
      %p88 = scmp.ne.s32.totalorder %s79, %s80
      %p89 = scmp.eq.s32.totalorder %s27, 0
      %p90 = por %p88, %p89
      %p91 = scmp.ne.s32.totalorder %s79, %s80
      %p92 = scmp.eq.s32.totalorder %s28, 1
      %p93 = por %p91, %p92
      %p95 = scmp.ne.s32.totalorder %s80, %s94
      %p96 = scmp.eq.s32.totalorder %s28, 0
      %p97 = por %p95, %p96
      %s99 = sadd.s32 %s98, 1
      %p102 = scmp.eq.s32.totalorder %s22, 1
      %p103 = scmp.ne.s32.totalorder %s98, %s100
      %p104 = scmp.eq.s32.totalorder %s22, 0
      %p105 = por %p103, %p104
      %p106 = scmp.ne.s32.totalorder %s98, %s100
      %p107 = scmp.eq.s32.totalorder %s27, 1
      %p108 = por %p106, %p107
      %p109 = scmp.ne.s32.totalorder %s100, %s101
      %p110 = scmp.eq.s32.totalorder %s27, 0
      %p111 = por %p109, %p110
      %p112 = scmp.ne.s32.totalorder %s100, %s101
      %p113 = scmp.eq.s32.totalorder %s28, 1
      %p114 = por %p112, %p113
      %p116 = scmp.ne.s32.totalorder %s101, %s115
      %p117 = scmp.eq.s32.totalorder %s28, 0
      %p118 = por %p116, %p117
      %s119 = ssub.s32 %s22, %s29
      %p120 = scmp.eq.s32.totalorder %s119, 0
      %s122 = sadd.s32 %s121, 1
      %s123 = scalar_select %p120, %s121, %s122
      %p126 = pneg %p120
      %p127 = scmp.eq.s32.totalorder %s22, 1
      %p128 = por %p126, %p127
      %p129 = scmp.ne.s32.totalorder %s121, %s124
      %p130 = scmp.eq.s32.totalorder %s22, 0
      %p131 = por %p129, %p130
      %p132 = scmp.ne.s32.totalorder %s121, %s124
      %p133 = scmp.eq.s32.totalorder %s27, 1
      %p134 = por %p132, %p133
      %p135 = scmp.ne.s32.totalorder %s124, %s125
      %p136 = scmp.eq.s32.totalorder %s27, 0
      %p137 = por %p135, %p136
      %p138 = scmp.ne.s32.totalorder %s124, %s125
      %p139 = scmp.eq.s32.totalorder %s28, 1
      %p140 = por %p138, %p139
      %p142 = scmp.ne.s32.totalorder %s125, %s141
      %p143 = scmp.eq.s32.totalorder %s28, 0
      %p144 = por %p142, %p143
      %s145 = ssub.s32 %s22, %s29
      %p146 = scmp.eq.s32.totalorder %s145, 0
      %s148 = sadd.s32 %s147, 1
      %s149 = scalar_select %p146, %s147, %s148
      %p152 = pneg %p146
      %p153 = scmp.eq.s32.totalorder %s22, 1
      %p154 = por %p152, %p153
      %p155 = scmp.ne.s32.totalorder %s147, %s150
      %p156 = scmp.eq.s32.totalorder %s22, 0
      %p157 = por %p155, %p156
      %p158 = scmp.ne.s32.totalorder %s147, %s150
      %p159 = scmp.eq.s32.totalorder %s27, 1
      %p160 = por %p158, %p159
      %p161 = scmp.ne.s32.totalorder %s150, %s151
      %p162 = scmp.eq.s32.totalorder %s27, 0
      %p163 = por %p161, %p162
      %p164 = scmp.ne.s32.totalorder %s150, %s151
      %p165 = scmp.eq.s32.totalorder %s28, 1
      %p166 = por %p164, %p165
      %p168 = scmp.ne.s32.totalorder %s151, %s167
      %p169 = scmp.eq.s32.totalorder %s28, 0
      %p170 = por %p168, %p169
      %p171 = scmp.le.s32.totalorder 1, %s22
      %p172 = scmp.lt.s32.totalorder %s22, 3
      %p173 = pnand %p171, %p172
      %p174 = pneg %p173
      // Predicated region
      $region9: #{tpu_custom_call.1} parent=5 // pred_check
        _
      $region10: #{tpu_custom_call.1} parent=5 // pred_check_branch
        %176 = sbr.rel (%p173) target = $region12
      $region11: #{tpu_custom_call.1} parent=5 // pred_region
        %s177 = ssub.s32 %s22, 1
        // Predicated region
        $region13: #{tpu_custom_call.1} parent=11 // pred_check
          %p178 = pneg %p69
        $region14: #{tpu_custom_call.1} parent=11 // pred_check_branch
          %180 = sbr.rel (%p178) target = $region16
        $region15: #{tpu_custom_call.1} parent=11 // pred_region
          %182 = vsyncadd [#allocation6], 0
          %s183 = sshll.u32 %s1, 4
          %s184 = int_to_ptr.hbm [resolvable:$true] %s183
          %s185 = sshll.u32 [#allocation5], 4
          %s186 = int_to_ptr.vmem [resolvable:$true] %s185
          %191 = dma.hbm_to_vmem [thread:$0]  %s184, 512, %s186, [#allocation6], 128, 128, 8
        $region16: #{tpu_custom_call.1} parent=11 // pred_fallthru
          _
        // Predicated region
        $region17: #{tpu_custom_call.1} parent=11 // pred_check
          %p192 = pneg %p90
        $region18: #{tpu_custom_call.1} parent=11 // pred_check_branch
          %194 = sbr.rel (%p192) target = $region20
        $region19: #{tpu_custom_call.1} parent=11 // pred_region
          _
        $region20: #{tpu_custom_call.1} parent=11 // pred_fallthru
          _
        // Predicated region
        $region21: #{tpu_custom_call.1} parent=11 // pred_check
          %p195 = pneg %p111
        $region22: #{tpu_custom_call.1} parent=11 // pred_check_branch
          %197 = sbr.rel (%p195) target = $region24
        $region23: #{tpu_custom_call.1} parent=11 // pred_region
          %199 = vsyncadd [#allocation6], 0
          %s200 = sshll.u32 %s3, 4
          %s201 = int_to_ptr.hbm [resolvable:$true] %s200
          %s202 = sshll.u32 [#allocation7], 4
          %s203 = int_to_ptr.vmem [resolvable:$true] %s202
          %208 = dma.hbm_to_vmem [thread:$0]  %s201, 256, %s203, [#allocation6], 64, 64, 4
        $region24: #{tpu_custom_call.1} parent=11 // pred_fallthru
          _
      $region12: #{tpu_custom_call.1} parent=5 // pred_fallthru
        _
      %p209 = scmp.lt.s32.totalorder %s22, 2
      // Predicated region
      $region25: #{tpu_custom_call.1} parent=5 // pred_check
        %p210 = pneg %p209
      $region26: #{tpu_custom_call.1} parent=5 // pred_check_branch
        %212 = sbr.rel (%p210) target = $region28
      $region27: #{tpu_custom_call.1} parent=5 // pred_region
        // Predicated region
        $region29: #{tpu_custom_call.1} parent=27 // pred_check
          %p213 = pneg %p42
        $region30: #{tpu_custom_call.1} parent=27 // pred_check_branch
          %215 = sbr.rel (%p213) target = $region32
        $region31: #{tpu_custom_call.1} parent=27 // pred_region
          %s216 = sand.u32 %s32, 1
          %s217 = scalar_lea.sflag [#allocation3], %s216
          %s218 = sand.u32 %s32, 1
          %s219 = smul.addr %s218, 8
          %s220 = scalar_lea.vmem [#allocation2], %s219
          %222 = vsyncadd %s217, 0
          %s223 = smul.addr %s22, 8
          %s224 = scalar_lea.hbm %s0, %s223
          %s226 = sshll.u32 %s224, 4
          %s227 = int_to_ptr.hbm [resolvable:$true] %s226
          %s228 = sshll.u32 %s220, 4
          %s229 = int_to_ptr.vmem [resolvable:$true] %s228
          %231 = dma.hbm_to_vmem [thread:$0]  %s227, 128, %s229, %s217
        $region32: #{tpu_custom_call.1} parent=27 // pred_fallthru
          _
      $region28: #{tpu_custom_call.1} parent=5 // pred_fallthru
        _
      %p232 = scmp.le.s32.totalorder 1, %s22
      %p233 = scmp.lt.s32.totalorder %s22, 3
      %p234 = pnand %p232, %p233
      %p235 = pneg %p234
      // Predicated region
      $region33: #{tpu_custom_call.1} parent=5 // pred_check
        _
      $region34: #{tpu_custom_call.1} parent=5 // pred_check_branch
        %237 = sbr.rel (%p234) target = $region36
      $region35: #{tpu_custom_call.1} parent=5 // pred_region
        %s238 = ssub.s32 %s22, 1
        %s239 = sand.u32 %s35, 1
        %s240 = scalar_lea.sflag [#allocation3], %s239
        %s241 = sand.u32 %s35, 1
        %s242 = smul.addr %s241, 8
        %s243 = scalar_lea.vmem [#allocation2], %s242
        // Predicated region
        $region37: #{tpu_custom_call.1} parent=35 // pred_check
          %p244 = pneg %p48
        $region38: #{tpu_custom_call.1} parent=35 // pred_check_branch
          %246 = sbr.rel (%p244) target = $region40
        $region39: #{tpu_custom_call.1} parent=35 // pred_region
          %248 = dma.done %s240, 128
        $region40: #{tpu_custom_call.1} parent=35 // pred_fallthru
          _
        // Predicated region
        $region41: #{tpu_custom_call.1} parent=35 // pred_check
          %p249 = pneg %p69
        $region42: #{tpu_custom_call.1} parent=35 // pred_check_branch
          %251 = sbr.rel (%p249) target = $region44
        $region43: #{tpu_custom_call.1} parent=35 // pred_region
          %253 = dma.done [#allocation6], 512
        $region44: #{tpu_custom_call.1} parent=35 // pred_fallthru
          _
        // Predicated region
        $region45: #{tpu_custom_call.1} parent=35 // pred_check
          %p254 = pneg %p111
        $region46: #{tpu_custom_call.1} parent=35 // pred_check_branch
          %256 = sbr.rel (%p254) target = $region48
        $region47: #{tpu_custom_call.1} parent=35 // pred_region
          %258 = dma.done [#allocation6], 256
        $region48: #{tpu_custom_call.1} parent=35 // pred_fallthru
          _
        %s259 = sand.u32 %s35, 1
        %s260 = scalar_lea.sflag [#allocation3], %s259
        %s261 = sand.u32 %s35, 1
        %s262 = smul.addr %s261, 8
        %s263 = scalar_lea.vmem [#allocation2], %s262
        %p264 = pneg %p48
        %p265 = pneg %p45
        %p266 = pneg %p69
        %p267 = pneg %p66
        %p268 = pneg %p90
        %p269 = pneg %p87
        %p270 = pneg %p111
        %p271 = pneg %p108
        %p272 = pneg %p137
        %p273 = pneg %p134
        %s274 = sand.u32 %s124, 1
        %s275 = scalar_lea.sflag [#allocation4], %s274
        %s276 = sand.u32 %s124, 1
        %s277 = smul.addr %s276, 8
        %s278 = scalar_lea.vmem [#allocation8], %s277
        %p279 = pneg %p163
        %p280 = pneg %p160
        %s281 = sand.u32 %s150, 1
        %s282 = scalar_lea.sflag [#allocation10], %s281
        %s283 = sand.u32 %s150, 1
        %s284 = smul.addr %s283, 8
        %s285 = scalar_lea.vmem [#allocation9], %s284
        %v287 = vld [vmem:[%s243] sm:$0xff]
        %v288 = vld [vmem:[#allocation5] sm:$0xff]
        %v289 = vld [vmem:[#allocation5 + $0x8] sm:$0xff]
        %v290 = vld [vmem:[#allocation5 + $0x10] sm:$0xff]
        %v291 = vld [vmem:[#allocation5 + $0x18] sm:$0xff]
        %v292 = vld [vmem:[%s2] sm:$0x1]
        %v294 = vperm.slane %v292, 0
        %vm296 = vcmask 261120
        %v298 = vsel %vm296, %v287, 0
        %v301 = vsel %vm296, %v288, 0
        %v304 = vsel %vm296, %v289, 0
        %v307 = vsel %vm296, %v290, 0
        %v310 = vsel %vm296, %v291, 0
        %312 = vmatpush.xpose.msra.mxu0 0.0
        %313 = vmatpush.xpose.msra.mxu0 0.0
        %314 = vmatpush.xpose.msra.mxu0 0.0
        %315 = vmatpush.xpose.msra.mxu0 0.0
        %316 = vmatpush.xpose.msra.mxu0 0.0
        %317 = vmatpush.xpose.msra.mxu0 0.0
        %318 = vmatpush.xpose.msra.mxu0 0.0
        %319 = vmatpush.xpose.msra.mxu0 0.0
        %320 = vmatpush.xpose.msra.mxu0 0.0
        %321 = vmatpush.xpose.msra.mxu0 0.0
        %322 = vmatpush.xpose.msra.mxu0 0.0
        %323 = vmatpush.xpose.msra.mxu0 0.0
        %324 = vmatpush.xpose.msra.mxu0 %v310
        %325 = vmatpush.xpose.msra.mxu0 %v307
        %326 = vmatpush.xpose.msra.mxu0 %v304
        %327 = vmatpush.xpose.msra.mxu0 %v301
        %328 = vmatmul.f32.gmra.mxu0 %v298
        %v329 = vpop.f32.mrf.mxu0
        %v330 = vadd.f32 %v294, %v329
        %331 = vdwg.mxu0
        %v332 = vxor.u32 %v330, 2147483648
        %v333 = vmul.f32 %v332, 1.442695
        %v334 = vpow.pop %v333
        %v335 = vadd.f32 %v334, 1.0
        %v336 = vrcp.pop %v335
        %v337 = vmul.f32 %v335, %v336
        %v338 = vsub.f32 1.0, %v337
        %v339 = vmul.f32 %v336, %v338
        %v340 = vadd.f32 %v336, %v339
        %vm341 = vweird.f32 %v335
        %vm342 = vweird.f32 %v336
        %vm343 = vmor %vm341, %vm342
        %v344 = vsel %vm343, %v336, %v340
        %v345 = vand.u32 2147483647, %v335
        %vm346 = vcmp.eq.f32.partialorder %v345, 8.507059e+37
        %v347 = vand.u32 %v335, 2147483648
        %v348 = vor.u32 1.1754944e-38, %v347
        %v349 = vsel %vm346, %v348, %v344
        %v350 = vmul.f32 1.0, %v349
        %v351 = vsel %vm296, %v350, -inf
        %352 = vmax.xlane.f32.xlu0 %v351
        %v353 = vpop.xlane.xlu0 %352
        %vm354 = vcmp.gt.f32.partialorder 9.0, 0.0
        %v355 = vsel %vm354, %v353, -1.0
        %vm356 = vcmp.eq.f32.partialorder %v350, %v353
        %v357 = vsel %vm356, 1, 0
        %v358 = vcvt.s32.f32 %v357
        %v359 = vsel %vm296, %v358, 0.0
        %360 = vadd.xlane.f32.xlu0 %v359
        %v361 = vpop.xlane.xlu0 %360
        %v362 = vsub.f32 9.0, %v361
        %v363 = vsel %vm354, %v362, 9.0
        %v364 = vsel %vm356, -1.0, %v350
        %v365 = vsel %vm296, %v364, -inf
        %366 = vmax.xlane.f32.xlu0 %v365
        %v367 = vpop.xlane.xlu0 %366
        %vm368 = vcmp.gt.f32.partialorder %v363, 0.0
        %v369 = vsel %vm368, %v367, %v355
        %vm370 = vcmp.eq.f32.partialorder %v364, %v367
        %v371 = vsel %vm370, 1, 0
        %v372 = vcvt.s32.f32 %v371
        %v373 = vsel %vm296, %v372, 0.0
        %374 = vadd.xlane.f32.xlu0 %v373
        %v375 = vpop.xlane.xlu0 %374
        %v376 = vsub.f32 %v363, %v375
        %v377 = vsel %vm368, %v376, %v363
        %v378 = vsel %vm370, -1.0, %v364
        %v379 = vsel %vm296, %v378, -inf
        %380 = vmax.xlane.f32.xlu0 %v379
        %v381 = vpop.xlane.xlu0 %380
        %vm382 = vcmp.gt.f32.partialorder %v377, 0.0
        %v383 = vsel %vm382, %v381, %v369
        %vm384 = vcmp.eq.f32.partialorder %v378, %v381
        %v385 = vsel %vm384, 1, 0
        %v386 = vcvt.s32.f32 %v385
        %v387 = vsel %vm296, %v386, 0.0
        %388 = vadd.xlane.f32.xlu0 %v387
        %v389 = vpop.xlane.xlu0 %388
        %v390 = vsub.f32 %v377, %v389
        %v391 = vsel %vm382, %v390, %v377
        %v392 = vsel %vm384, -1.0, %v378
        %v393 = vsel %vm296, %v392, -inf
        %394 = vmax.xlane.f32.xlu0 %v393
        %v395 = vpop.xlane.xlu0 %394
        %vm396 = vcmp.gt.f32.partialorder %v391, 0.0
        %v397 = vsel %vm396, %v395, %v383
        %vm398 = vcmp.eq.f32.partialorder %v392, %v395
        %v399 = vsel %vm398, 1, 0
        %v400 = vcvt.s32.f32 %v399
        %v401 = vsel %vm296, %v400, 0.0
        %402 = vadd.xlane.f32.xlu0 %v401
        %v403 = vpop.xlane.xlu0 %402
        %v404 = vsub.f32 %v391, %v403
        %v405 = vsel %vm396, %v404, %v391
        %v406 = vsel %vm398, -1.0, %v392
        %v407 = vsel %vm296, %v406, -inf
        %408 = vmax.xlane.f32.xlu0 %v407
        %v409 = vpop.xlane.xlu0 %408
        %vm410 = vcmp.gt.f32.partialorder %v405, 0.0
        %v411 = vsel %vm410, %v409, %v397
        %vm412 = vcmp.eq.f32.partialorder %v406, %v409
        %v413 = vsel %vm412, 1, 0
        %v414 = vcvt.s32.f32 %v413
        %v415 = vsel %vm296, %v414, 0.0
        %416 = vadd.xlane.f32.xlu0 %v415
        %v417 = vpop.xlane.xlu0 %416
        %v418 = vsub.f32 %v405, %v417
        %v419 = vsel %vm410, %v418, %v405
        %v420 = vsel %vm412, -1.0, %v406
        %v421 = vsel %vm296, %v420, -inf
        %422 = vmax.xlane.f32.xlu0 %v421
        %v423 = vpop.xlane.xlu0 %422
        %vm424 = vcmp.gt.f32.partialorder %v419, 0.0
        %v425 = vsel %vm424, %v423, %v411
        %vm426 = vcmp.eq.f32.partialorder %v420, %v423
        %v427 = vsel %vm426, 1, 0
        %v428 = vcvt.s32.f32 %v427
        %v429 = vsel %vm296, %v428, 0.0
        %430 = vadd.xlane.f32.xlu0 %v429
        %v431 = vpop.xlane.xlu0 %430
        %v432 = vsub.f32 %v419, %v431
        %v433 = vsel %vm424, %v432, %v419
        %v434 = vsel %vm426, -1.0, %v420
        %v435 = vsel %vm296, %v434, -inf
        %436 = vmax.xlane.f32.xlu0 %v435
        %v437 = vpop.xlane.xlu0 %436
        %vm438 = vcmp.gt.f32.partialorder %v433, 0.0
        %v439 = vsel %vm438, %v437, %v425
        %vm440 = vcmp.eq.f32.partialorder %v434, %v437
        %v441 = vsel %vm440, 1, 0
        %v442 = vcvt.s32.f32 %v441
        %v443 = vsel %vm296, %v442, 0.0
        %444 = vadd.xlane.f32.xlu0 %v443
        %v445 = vpop.xlane.xlu0 %444
        %v446 = vsub.f32 %v433, %v445
        %v447 = vsel %vm438, %v446, %v433
        %v448 = vsel %vm440, -1.0, %v434
        %v449 = vsel %vm296, %v448, -inf
        %450 = vmax.xlane.f32.xlu0 %v449
        %v451 = vpop.xlane.xlu0 %450
        %vm452 = vcmp.gt.f32.partialorder %v447, 0.0
        %v453 = vsel %vm452, %v451, %v439
        %vm454 = vcmp.eq.f32.partialorder %v448, %v451
        %v455 = vsel %vm454, 1, 0
        %v456 = vcvt.s32.f32 %v455
        %v457 = vsel %vm296, %v456, 0.0
        %458 = vadd.xlane.f32.xlu0 %v457
        %v459 = vpop.xlane.xlu0 %458
        %v460 = vsub.f32 %v447, %v459
        %v461 = vsel %vm452, %v460, %v447
        %v462 = vsel %vm454, -1.0, %v448
        %v463 = vsel %vm296, %v462, -inf
        %464 = vmax.xlane.f32.xlu0 %v463
        %v465 = vpop.xlane.xlu0 %464
        %vm466 = vcmp.gt.f32.partialorder %v461, 0.0
        %v467 = vsel %vm466, %v465, %v453
        %vm468 = vcmp.gt.f32.partialorder %v350, %v467
        %vm469 = vcmp.eq.f32.partialorder %v350, %v467
        %v470 = vsel %vm468, 1, 0
        %v471 = vcvt.s32.f32 %v470
        %v472 = vsel %vm296, %v471, 0.0
        %473 = vadd.xlane.f32.xlu0 %v472
        %v474 = vpop.xlane.xlu0 %473
        %v475 = vsel %vm469, 1, 0
        %v476 = vcvt.s32.f32 %v475
        %v477 = vpack.c.bf16 %v476, %v476
        %v478 = vld [vmem:[#allocation7] sm:$0xf]
        %v479 = vld [vmem:[#allocation7 + $0x4] sm:$0xf]
        %v480 = vld [vmem:[#allocation7 + $0x8] sm:$0xf]
        %v481 = vld [vmem:[#allocation7 + $0xc] sm:$0xf]
        %v486 = vunpack.c.l.b16 %v478
        %v487 = vunpack.c.l.b16 %v479
        %v488 = vunpack.c.l.b16 %v480
        %v489 = vunpack.c.l.b16 %v481
        %v490 = vpack.c.b16 %v487, %v486
        %v491 = vpack.c.b16 %v489, %v488
        %v495 = vsel %vm296, %v477, 0
        %497 = vmatpush.bf16.msra.mxu0 0
        %498 = vmatpush.bf16.msra.mxu0 0
        %499 = vmatpush.bf16.msra.mxu0 0
        %500 = vmatpush.bf16.msra.mxu0 0
        %501 = vmatpush.bf16.msra.mxu0 0
        %502 = vmatpush.bf16.msra.mxu0 0
        %503 = vmatpush.bf16.msra.mxu0 %v491
        %504 = vmatpush.bf16.msra.mxu0 %v490
        %505 = vmatmul.bf16.gmra.mxu0 %v495
        %v506 = vpop.f32.mrf.mxu0
        %v507 = vadd.f32 0.0, %v506
        %v508 = vpop.f32.mrf.mxu0
        %509 = vdwg.mxu0
        %v510 = vsub.f32 9.0, %v474
        %vm511 = vcmp.le.f32.partialorder %v507, %v510
        %vm512 = vmand %vm469, %vm511
        %vm513 = vmor %vm468, %vm512
        %v514 = vsel %vm513, %v287, 0.0
        %515 = vst.msk [vmem:[%s278] sm:$0xff] %vm296, %v514
        %516 = vst.msk [vmem:[%s285] sm:$0xff] %vm296, %v350
        %s517 = sand.u32 %s124, 1
        %s518 = scalar_lea.sflag [#allocation4], %s517
        %s519 = sand.u32 %s124, 1
        %s520 = smul.addr %s519, 8
        %s521 = scalar_lea.vmem [#allocation8], %s520
        %s522 = sand.u32 %s150, 1
        %s523 = scalar_lea.sflag [#allocation10], %s522
        %s524 = sand.u32 %s150, 1
        %s525 = smul.addr %s524, 8
        %s526 = scalar_lea.vmem [#allocation9], %s525
        // Predicated region
        $region49: #{tpu_custom_call.1} parent=35 // pred_check
          %p527 = pneg %p134
        $region50: #{tpu_custom_call.1} parent=35 // pred_check_branch
          %529 = sbr.rel (%p527) target = $region52
        $region51: #{tpu_custom_call.1} parent=35 // pred_region
          %531 = vsyncadd %s518, 0
          %s532 = smul.addr %s27, 8
          %s533 = scalar_lea.hbm %s4, %s532
          %s535 = sshll.u32 %s521, 4
          %s536 = int_to_ptr.vmem [resolvable:$true] %s535
          %s537 = sshll.u32 %s533, 4
          %s538 = int_to_ptr.hbm [resolvable:$true] %s537
          %540 = dma.vmem_to_hbm [thread:$0]  %s536, 128, %s538, %s518
        $region52: #{tpu_custom_call.1} parent=35 // pred_fallthru
          _
        // Predicated region
        $region53: #{tpu_custom_call.1} parent=35 // pred_check
          %p541 = pneg %p160
        $region54: #{tpu_custom_call.1} parent=35 // pred_check_branch
          %543 = sbr.rel (%p541) target = $region56
        $region55: #{tpu_custom_call.1} parent=35 // pred_region
          %545 = vsyncadd %s523, 0
          %s546 = smul.addr %s27, 8
          %s547 = scalar_lea.hbm %s5, %s546
          %s549 = sshll.u32 %s526, 4
          %s550 = int_to_ptr.vmem [resolvable:$true] %s549
          %s551 = sshll.u32 %s547, 4
          %s552 = int_to_ptr.hbm [resolvable:$true] %s551
          %554 = dma.vmem_to_hbm [thread:$0]  %s550, 128, %s552, %s523
        $region56: #{tpu_custom_call.1} parent=35 // pred_fallthru
          _
      $region36: #{tpu_custom_call.1} parent=5 // pred_fallthru
        _
      %p555 = scmp.le.s32.totalorder 2, %s22
      // Predicated region
      $region57: #{tpu_custom_call.1} parent=5 // pred_check
        %p556 = pneg %p555
      $region58: #{tpu_custom_call.1} parent=5 // pred_check_branch
        %558 = sbr.rel (%p556) target = $region60
      $region59: #{tpu_custom_call.1} parent=5 // pred_region
        %s559 = ssub.s32 %s22, 2
        // Predicated region
        $region61: #{tpu_custom_call.1} parent=59 // pred_check
          %p560 = pneg %p140
        $region62: #{tpu_custom_call.1} parent=59 // pred_check_branch
          %562 = sbr.rel (%p560) target = $region64
        $region63: #{tpu_custom_call.1} parent=59 // pred_region
          %s563 = sand.u32 %s125, 1
          %s564 = scalar_lea.sflag [#allocation4], %s563
          %s565 = sand.u32 %s125, 1
          %s566 = smul.addr %s565, 8
          %s567 = scalar_lea.vmem [#allocation8], %s566
          %569 = dma.done %s564, 128
        $region64: #{tpu_custom_call.1} parent=59 // pred_fallthru
          _
        // Predicated region
        $region65: #{tpu_custom_call.1} parent=59 // pred_check
          %p570 = pneg %p166
        $region66: #{tpu_custom_call.1} parent=59 // pred_check_branch
          %572 = sbr.rel (%p570) target = $region68
        $region67: #{tpu_custom_call.1} parent=59 // pred_region
          %s573 = sand.u32 %s151, 1
          %s574 = scalar_lea.sflag [#allocation10], %s573
          %s575 = sand.u32 %s151, 1
          %s576 = smul.addr %s575, 8
          %s577 = scalar_lea.vmem [#allocation9], %s576
          %579 = dma.done %s574, 128
        $region68: #{tpu_custom_call.1} parent=59 // pred_fallthru
          _
      $region60: #{tpu_custom_call.1} parent=5 // pred_fallthru
        _
    $region6: #{tpu_custom_call.1} parent=1 // loop_footer
      %s26 = sadd.s32 1, %s22
    $region7: #{tpu_custom_call.1} parent=1 // loop_footer_branch
      %21 = sbr.rel target = $region3
    $region8: #{tpu_custom_call.1} parent=1 // loop_exit
      _
    %580 = vsyncpa [#allocation3], 1
    %s581 = scalar_lea.sflag [#allocation3], 1
    %582 = vsyncpa %s581, 1
    %583 = vsyncpa [#allocation6], 1
    %584 = vsyncpa [#allocation4], 1
    %s585 = scalar_lea.sflag [#allocation4], 1
    %586 = vsyncpa %s585, 1
    %587 = vsyncpa [#allocation10], 1
    %s588 = scalar_lea.sflag [#allocation10], 1
    %589 = vsyncpa %s588, 1

</llo_original>
